<compile_context>
chip_gen: v7x
topology: tpu7x:2x2x1
jax: 0.10.0
libtpu: 0.0.40
codegen_flags: <defaults>
</compile_context>

<pallas_src>
import functools

import jax
import jax.numpy as jnp
import numpy as np
from jax import lax
from jax.experimental import pallas as pl
from jax.experimental.pallas import tpu as pltpu

EPS = 1e-5


def _round_up(n, m):
    return ((n + m - 1) // m) * m


@functools.lru_cache(maxsize=None)
def _roll_matches_jnp_roll() -> bool:
    """Calibrate pltpu.roll's lane-rotation direction once on the real backend.

    Returns True when pltpu.roll(x, s, axis)[..., i] == x[..., (i - s) % n]
    (jnp.roll semantics). The im2col lane shifts below use this flag so they
    are correct under either rotation convention.
    """
    n = 256

    def probe_kernel(x_ref, o_ref):
        o_ref[...] = pltpu.roll(x_ref[...], 1, axis=1)

    x = lax.broadcasted_iota(jnp.float32, (8, n), 1)
    y = pl.pallas_call(
        probe_kernel, out_shape=jax.ShapeDtypeStruct((8, n), jnp.float32))(x)
    return bool(jax.device_get(y)[0, 0] == float(n - 1))


def unet_block_kernel(x_ref, w1_ref, b1_ref, g1_ref, be1_ref,
                      w2_ref, b2_ref, g2_ref, be2_ref, out_ref,
                      *, H, W, roll_is_jnp):
    """Fused (conv3x3 + BN + ReLU) x 2 in channel-major / spatial-on-lanes layout.

    x_ref   : (Cin_p,  M)          f32, M = N*H*W flattened (n, h, w) on lanes
    w*_ref  : (Cout_p, 9*Cin_p)    bf16, column index = (kh*3 + kw)*Cin_p + ci
    b/g/be  : (C_p, 1)             f32 conv bias, BN gamma, BN beta
    out_ref : (Cout_p, M)          f32 (lane-dense)
    """
    _, M = x_ref.shape
    inv_m = 1.0 / M

    # Per-lane (h, w) coordinates of the flattened spatial axis.
    lane = lax.broadcasted_iota(jnp.int32, (1, M), 1)
    w_id = lane % W
    h_id = (lane // W) % H

    # Validity mask per tap: replaces a zero-padded scratch (edge taps masked).
    masks = {}
    for dh in (-1, 0, 1):
        for dw in (-1, 0, 1):
            masks[(dh, dw)] = ((h_id + dh >= 0) & (h_id + dh < H) &
                               (w_id + dw >= 0) & (w_id + dw < W))

    def shift_lanes(v, d):
        # out[:, m] = v[:, (m + d) % M]; wrapped lanes are killed by the mask.
        if d == 0:
            return v
        amt = (-d) % M if roll_is_jnp else d % M
        return pltpu.roll(v, amt, axis=1)

    def im2col(v):
        # (C, M) -> (9*C, M) patch matrix; row-block order = kh-major, then kw.
        parts = []
        for dh in (-1, 0, 1):
            for dw in (-1, 0, 1):
                shifted = shift_lanes(v, dh * W + dw)
                parts.append(jnp.where(masks[(dh, dw)], shifted, 0.0))
        return jnp.concatenate(parts, axis=0)

    def bn_relu(acc, g_ref, be_ref):
        # One-pass training-mode batch stats over the lane axis (= all N,H,W).
        s = jnp.sum(acc, axis=1, keepdims=True)
        ss = jnp.sum(acc * acc, axis=1, keepdims=True)
        mean = s * inv_m
        var = ss * inv_m - mean * mean           # biased variance (PyTorch BN)
        scale = g_ref[...] * lax.rsqrt(var + EPS)
        offs = be_ref[...] - mean * scale
        return jnp.maximum(acc * scale + offs, 0.0)

    # ---- conv1: a single MXU matmul over K = 9*Cin_p (taps folded into K) ----
    p1 = im2col(x_ref[...]).astype(jnp.bfloat16)
    acc1 = jnp.dot(w1_ref[...], p1,
                   preferred_element_type=jnp.float32) + b1_ref[...]
    h1 = bn_relu(acc1, g1_ref, be1_ref)

    # ---- conv2 ----------------------------------------------------------------
    p2 = im2col(h1).astype(jnp.bfloat16)
    acc2 = jnp.dot(w2_ref[...], p2,
                   preferred_element_type=jnp.float32) + b2_ref[...]
    out_ref[...] = bn_relu(acc2, g2_ref, be2_ref)


@functools.partial(jax.jit, static_argnames=("roll_is_jnp",))
def _unet_block_impl(x_nchw, w1, b1, g1, be1, w2, b2, g2, be2, *, roll_is_jnp):
    N, Cin, H, W = x_nchw.shape
    Cmid, Cout = w1.shape[0], w2.shape[0]
    Cin_p, Cmid_p, Cout_p = (_round_up(c, 8) for c in (Cin, Cmid, Cout))
    M = N * H * W

    # NCHW -> channel-major, flattened-spatial-on-lanes (C, N*H*W); pad channel
    # counts to sublane multiples so all in-kernel concats / matmuls are aligned.
    x_t = jnp.transpose(x_nchw, (1, 0, 2, 3)).reshape(Cin, M).astype(jnp.float32)
    x_t = jnp.pad(x_t, ((0, Cin_p - Cin), (0, 0)))

    def conv_weight(w, cin, cin_p, cout_p):
        # OIHW -> (cout_p, 9*cin_p), column = (kh*3 + kw)*cin_p + ci, bf16.
        wk = jnp.transpose(w, (0, 2, 3, 1)).astype(jnp.float32)
        wk = jnp.pad(wk, ((0, cout_p - w.shape[0]), (0, 0), (0, 0),
                          (0, cin_p - cin)))
        return wk.reshape(cout_p, 9 * cin_p).astype(jnp.bfloat16)

    w1_k = conv_weight(w1, Cin, Cin_p, Cmid_p)
    w2_k = conv_weight(w2, Cmid, Cmid_p, Cout_p)

    def chan(v, c_p):
        return jnp.pad(v.astype(jnp.float32), (0, c_p - v.shape[0])).reshape(c_p, 1)

    b1_k, g1_k, be1_k = (chan(v, Cmid_p) for v in (b1, g1, be1))
    b2_k, g2_k, be2_k = (chan(v, Cout_p) for v in (b2, g2, be2))

    full = lambda shape: pl.BlockSpec(shape, lambda i: (0,) * len(shape))

    cost = pl.CostEstimate(
        flops=2 * M * 9 * Cin_p * Cmid_p + 2 * M * 9 * Cmid_p * Cout_p,
        transcendentals=Cmid_p + Cout_p,
        bytes_accessed=(x_t.size * 4 + w1_k.size * 2 + w2_k.size * 2
                        + 3 * (Cmid_p + Cout_p) * 4 + Cout_p * M * 4),
    )

    out_t = pl.pallas_call(
        functools.partial(unet_block_kernel, H=H, W=W, roll_is_jnp=roll_is_jnp),
        out_shape=jax.ShapeDtypeStruct((Cout_p, M), jnp.float32),
        grid=(1,),
        in_specs=[
            full((Cin_p, M)),
            full((Cmid_p, 9 * Cin_p)),
            full((Cmid_p, 1)), full((Cmid_p, 1)), full((Cmid_p, 1)),
            full((Cout_p, 9 * Cmid_p)),
            full((Cout_p, 1)), full((Cout_p, 1)), full((Cout_p, 1)),
        ],
        out_specs=full((Cout_p, M)),
        compiler_params=pltpu.CompilerParams(
            dimension_semantics=("arbitrary",),
            vmem_limit_bytes=32 * 1024 * 1024,
        ),
        cost_estimate=cost,
    )(x_t, w1_k, b1_k, g1_k, be1_k, w2_k, b2_k, g2_k, be2_k)

    # Lane-dense (Cout_p, M) -> NCHW (drop padded output channels).
    out = out_t[:Cout].reshape(Cout, N, H, W)
    return jnp.transpose(out, (1, 0, 2, 3))


def unet_block_pallas(x, w1, b1, g1, be1, w2, b2, g2, be2):
    """NCHW in / NCHW out, matching nn.Conv2d + nn.BatchNorm2d (training mode)."""
    return _unet_block_impl(x, w1, b1, g1, be1, w2, b2, g2, be2,
                            roll_is_jnp=_roll_matches_jnp_roll())


def unet_block_reference(x, w1, b1, g1, be1, w2, b2, g2, be2, conv_dtype=None):
    """Pure-JAX reference matching PyTorch training-mode forward (NCHW, f32).

    If conv_dtype is given, conv inputs/weights are rounded to that dtype first
    (accumulation stays f32) so the reference mirrors the kernel's bf16 MXU
    operands for a tight comparison.
    """
    def q(a):
        return a.astype(conv_dtype).astype(jnp.float32) if conv_dtype is not None else a

    def conv(x, w, b):
        y = lax.conv_general_dilated(
            q(x), q(w), window_strides=(1, 1), padding="SAME",
            dimension_numbers=("NCHW", "OIHW", "NCHW"),
            precision=lax.Precision.HIGHEST)
        return y + b[None, :, None, None]

    def bn_relu(y, g, be):
        mean = jnp.mean(y, axis=(0, 2, 3), keepdims=True)
        var = jnp.mean((y - mean) ** 2, axis=(0, 2, 3), keepdims=True)
        y = (y - mean) * lax.rsqrt(var + EPS)
        y = y * g[None, :, None, None] + be[None, :, None, None]
        return jnp.maximum(y, 0.0)

    y = bn_relu(conv(x, w1, b1), g1, be1)
    y = bn_relu(conv(y, w2, b2), g2, be2)
    return y


if __name__ == "__main__":
    # Small shapes consistent with the module: UnetBlock(4, 8, 8), x: (2, 4, 16, 16)
    N, Cin, Cmid, Cout, H, W = 2, 4, 8, 8, 16, 16

    key = jax.random.PRNGKey(0)
    ks = jax.random.split(key, 9)
    x = jax.random.normal(ks[0], (N, Cin, H, W), jnp.float32)

    # Deterministic synthetic parameters (PyTorch shapes: Conv2d OIHW, BN per-channel).
    w1 = jax.random.normal(ks[1], (Cmid, Cin, 3, 3), jnp.float32) * 0.1
    b1 = jax.random.normal(ks[2], (Cmid,), jnp.float32) * 0.1
    g1 = 1.0 + 0.1 * jax.random.normal(ks[3], (Cmid,), jnp.float32)
    be1 = 0.1 * jax.random.normal(ks[4], (Cmid,), jnp.float32)
    w2 = jax.random.normal(ks[5], (Cout, Cmid, 3, 3), jnp.float32) * 0.1
    b2 = jax.random.normal(ks[6], (Cout,), jnp.float32) * 0.1
    g2 = 1.0 + 0.1 * jax.random.normal(ks[7], (Cout,), jnp.float32)
    be2 = 0.1 * jax.random.normal(ks[8], (Cout,), jnp.float32)

    out = jax.block_until_ready(
        unet_block_pallas(x, w1, b1, g1, be1, w2, b2, g2, be2))

    # Tight check: reference with the same bf16 rounding of conv operands
    # (f32 accumulation on both sides) -> differences are only op-ordering.
    ref_bf16 = unet_block_reference(x, w1, b1, g1, be1, w2, b2, g2, be2,
                                    conv_dtype=jnp.bfloat16)
    np.testing.assert_allclose(np.asarray(out), np.asarray(ref_bf16),
                               rtol=5e-3, atol=5e-3)

    # Loose check: exact f32 PyTorch-semantics reference (tolerance sized for
    # the kernel's bf16 MXU operands).
    ref_f32 = unet_block_reference(x, w1, b1, g1, be1, w2, b2, g2, be2)
    np.testing.assert_allclose(np.asarray(out), np.asarray(ref_f32),
                               rtol=1e-1, atol=1e-1)

    print("KERNEL_OK")
</pallas_src>

<mosaic_0001>
module attributes {stable_mosaic.version = 11 : i64} {
  func.func @probe_kernel(%arg0: memref<8x256xf32, #tpu.memory_space<vmem>>, %arg1: memref<8x256xf32, #tpu.memory_space<vmem>>) attributes {dimension_semantics = [], scalar_prefetch = 0 : i64, scratch_operands = 0 : i64, tpu.core_type = #tpu.core_type<tc>} {
    %c0 = arith.constant 0 : index
    %c0_0 = arith.constant 0 : index
    %0 = vector.load %arg0[%c0, %c0_0] : memref<8x256xf32, #tpu.memory_space<vmem>>, vector<8x256xf32>
    %c1_i32 = arith.constant 1 : i32
    %1 = tpu.dynamic_rotate %0 by %c1_i32 dim 1 : vector<8x256xf32>, i32 -> vector<8x256xf32>
    %c0_1 = arith.constant 0 : index
    %c0_2 = arith.constant 0 : index
    %2 = vector.load %arg1[%c0_1, %c0_2] : memref<8x256xf32, #tpu.memory_space<vmem>>, vector<8x256xf32>
    tpu.vector_store %arg1[%c0_1, %c0_2], %1 {strides = array<i32>} : memref<8x256xf32, #tpu.memory_space<vmem>>, vector<8x256xf32>,
    return
  }
}

</mosaic_0001>

<llo_original>
// kernel: tpu_custom_call.1
$region0: #{tpu_custom_call.1}
  #allocation0 [shape = 'u32[]', space=smem, size = 0x4, offset = 0x4, fixed_abs, tag = 'smem constant byte address 0x4 - core index']
  #allocation1 [shape = 'u32[144,128]{1,0:T(1,128)}', space=vmem, size = 0x12000, scoped, tag = 'internal scratch']
  %s0 = inlined_call_operand.hbm [shape: f32[8,256], index: 0, kind: input, shape index: {}]
  %s1 = inlined_call_operand.hbm [shape: f32[8,256], index: 1, kind: output, shape index: {}]
  %s2 = sld [smem:[#allocation0]]
  $region18: #{tpu_custom_call.1} parent=0
    _
  %s4 = ssub.s32 1, %s2
  %s5 = scalar_select 0, %s4, %s2
  $region1: #{tpu_custom_call.1} parent=0
    #allocation2 [shape = 'u8[8192]{0}', space=vmem, size = 0x2000, scoped, tag = 'input window, operand 0, single buffered']
    #allocation3 [shape = 's32[1]{0}', space=sflag, size = 0x4, scoped, tag = 'scoped memory for tpu_custom_call.1']
    #allocation4 [shape = 's32[1]{0}', space=sflag, size = 0x4, scoped, tag = 'scoped memory for tpu_custom_call.1']
    #allocation5 [shape = 'u8[8192]{0}', space=vmem, size = 0x2000, scoped, tag = 'output window, operand 0, single buffered']
    %6 = vsyncpa [#allocation3], 0
    %7 = vsyncpa [#allocation4], 0
    // Predicated region
    $region2: #{tpu_custom_call.1} parent=1 // pred_check
      _
    $region3: #{tpu_custom_call.1} parent=1 // pred_check_branch
      %9 = sbr.rel (0) target = $region5
    $region4: #{tpu_custom_call.1} parent=1 // pred_region
      %s11 = ssub.s32 256, 256
      %12 = vsyncadd [#allocation3], %s11
      %s14 = sshll.u32 [#allocation2], 4
      %s15 = int_to_ptr.vmem [resolvable:$true] %s14
      %17 = dma.hbm_to_vmem [thread:$0]  %s0, 256, %s15, [#allocation3]
    $region5: #{tpu_custom_call.1} parent=1 // pred_fallthru
      _
    // Predicated region
    $region6: #{tpu_custom_call.1} parent=1 // pred_check
      _
    $region7: #{tpu_custom_call.1} parent=1 // pred_check_branch
      %19 = sbr.rel (0) target = $region9
    $region8: #{tpu_custom_call.1} parent=1 // pred_region
      %20 = dma.done [#allocation3], 256
    $region9: #{tpu_custom_call.1} parent=1 // pred_fallthru
      _
    %v21 = vld [vmem:[#allocation2] sm:$0xff]
    %v22 = vld [vmem:[#allocation2 + $0x8] sm:$0xff]
    %23 = vrot.lane.b32.xlu0 %v21, 1
    %v24 = vpop.permute.xlu0 %23
    %25 = vrot.lane.b32.xlu0 %v22, 1
    %v26 = vpop.permute.xlu0 %25
    %v27 = vlaneseq
    %v28 = vand.u32 %v27, 127
    %vm29 = vcmp.lt.s32.totalorder %v28, 1
    %v30 = vsel %vm29, %v24, %v26
    %v31 = vsel %vm29, %v26, %v24
    %32 = vst [vmem:[#allocation5] sm:$0xff] %v31
    %33 = vst [vmem:[#allocation5 + $0x8] sm:$0xff] %v30
    // Predicated region
    $region10: #{tpu_custom_call.1} parent=1 // pred_check
      _
    $region11: #{tpu_custom_call.1} parent=1 // pred_check_branch
      %35 = sbr.rel (0) target = $region13
    $region12: #{tpu_custom_call.1} parent=1 // pred_region
      %s37 = ssub.s32 256, 256
      %38 = vsyncadd [#allocation4], %s37
      %s40 = sshll.u32 [#allocation5], 4
      %s41 = int_to_ptr.vmem [resolvable:$true] %s40
      %43 = dma.vmem_to_hbm [thread:$0]  %s41, 256, %s1, [#allocation4]
    $region13: #{tpu_custom_call.1} parent=1 // pred_fallthru
      _
    // Predicated region
    $region14: #{tpu_custom_call.1} parent=1 // pred_check
      _
    $region15: #{tpu_custom_call.1} parent=1 // pred_check_branch
      %45 = sbr.rel (0) target = $region17
    $region16: #{tpu_custom_call.1} parent=1 // pred_region
      %46 = dma.done [#allocation4], 256
    $region17: #{tpu_custom_call.1} parent=1 // pred_fallthru
      _
    %47 = vsyncpa [#allocation3], 1
    %48 = vsyncpa [#allocation4], 1

</llo_original>
